<compile_context>
chip_gen: v7x
topology: tpu7x:2x2x1
jax: 0.10.0
libtpu: 0.0.40
codegen_flags: <defaults>
</compile_context>

<pallas_src>
import functools

import jax
import jax.numpy as jnp
from jax.experimental import pallas as pl
from jax.experimental.pallas import tpu as pltpu


def _interp_matrix(in_size: int, out_size: int) -> jnp.ndarray:
    """(out_size, in_size) bilinear weight matrix, PyTorch align_corners=False."""
    scale = in_size / out_size
    o = jnp.arange(out_size, dtype=jnp.float32)
    # PyTorch area_pixel_compute_source_index (align_corners=False): clamp at 0.
    s = jnp.maximum(scale * (o + 0.5) - 0.5, 0.0)
    i0 = jnp.clip(jnp.floor(s).astype(jnp.int32), 0, in_size - 1)
    i1 = jnp.minimum(i0 + 1, in_size - 1)
    w1 = s - i0.astype(jnp.float32)
    w0 = 1.0 - w1
    rows = jnp.arange(out_size)
    W = jnp.zeros((out_size, in_size), jnp.float32)
    W = W.at[rows, i0].add(w0)
    W = W.at[rows, i1].add(w1)
    return W


def _merge_skip_kernel(wt_ref, x_ref, skip_ref, o_ref, *, cx, hw_in, hw_out):
    # wt_ref:   (Hx*Wx, Hs*Ws)            resident interpolation weight
    # x_ref:    (tile, Cx*Hx*Wx)
    # skip_ref: (tile, Cs*Hs*Ws)
    # o_ref:    (tile, (Cx+Cs)*Hs*Ws)
    wt = wt_ref[...]
    x_all = x_ref[...]
    # Static unroll over channels: each iteration is one lane-dense
    # (tile, hw_in) @ (hw_in, hw_out) MXU matmul with f32 accumulation.
    for c in range(cx):
        xc = x_all[:, c * hw_in:(c + 1) * hw_in]
        up = jnp.dot(xc, wt, preferred_element_type=jnp.float32)
        o_ref[:, c * hw_out:(c + 1) * hw_out] = up.astype(o_ref.dtype)
    # Fused concat: copy skip straight into the tail channels of the output.
    o_ref[:, cx * hw_out:] = skip_ref[...].astype(o_ref.dtype)


@functools.partial(jax.jit, static_argnames=("n_tile",))
def merge_skip(x, skip, n_tile=256):
    """Pallas implementation of MergeSkip.forward.

    x:    (T, B, Cx, Hx, Wx)
    skip: (T, B, Cs, Hs, Ws)
    returns (T, B, Cx + Cs, Hs, Ws)
    """
    T, B, Cx, Hx, Wx = x.shape
    Ts, Bs, Cs, Hs, Ws = skip.shape
    assert (T, B) == (Ts, Bs), "x and skip must share (T, B)"
    TB = T * B
    hw_in, hw_out = Hx * Wx, Hs * Ws
    out_dtype = jnp.result_type(x.dtype, skip.dtype)

    # Combined H/W bilinear weights folded into a single matrix:
    # kron(Wh, Ww).T has shape (Hx*Wx, Hs*Ws); row-major (h*Wx+w) -> (p*Ws+o).
    wh = _interp_matrix(Hx, Hs)            # (Hs, Hx)
    ww = _interp_matrix(Wx, Ws)            # (Ws, Wx)
    wt = jnp.kron(wh, ww).T                # (Hx*Wx, Hs*Ws)
    w_dtype = jnp.bfloat16 if x.dtype == jnp.bfloat16 else jnp.float32
    wt = wt.astype(w_dtype)                # bf16 weights if activations are bf16

    # Contiguous reshapes only (no HBM transpose/copy).
    x2 = x.reshape(TB, Cx * hw_in)
    s2 = skip.reshape(TB, Cs * hw_out)

    # Tile the fused T*B axis.  n_tile must be a multiple of 8 (sublanes);
    # if TB is smaller, take the whole axis (full-dim block is always legal).
    assert n_tile % 8 == 0, "n_tile must be a multiple of 8"
    tile = TB if TB <= n_tile else n_tile
    grid = (pl.cdiv(TB, tile),)            # non-divisible tail: Pallas masks it

    # Explicit VMEM budget: double-buffered x/skip/out blocks + resident weight.
    out_item = jnp.dtype(out_dtype).itemsize
    block_bytes = (tile * Cx * hw_in * x.dtype.itemsize
                   + tile * Cs * hw_out * skip.dtype.itemsize
                   + tile * (Cx + Cs) * hw_out * out_item)
    weight_bytes = hw_in * hw_out * jnp.dtype(w_dtype).itemsize
    vmem_limit = min(64 * 1024 * 1024,           # conservative cap (v7x = 64 MiB)
                     2 * block_bytes + 2 * weight_bytes + (4 << 20))

    out2 = pl.pallas_call(
        functools.partial(_merge_skip_kernel, cx=Cx, hw_in=hw_in, hw_out=hw_out),
        out_shape=jax.ShapeDtypeStruct((TB, (Cx + Cs) * hw_out), out_dtype),
        grid=grid,
        in_specs=[
            pl.BlockSpec((hw_in, hw_out), lambda i: (0, 0)),       # weight (resident)
            pl.BlockSpec((tile, Cx * hw_in), lambda i: (i, 0)),    # x rows
            pl.BlockSpec((tile, Cs * hw_out), lambda i: (i, 0)),   # skip rows
        ],
        out_specs=pl.BlockSpec((tile, (Cx + Cs) * hw_out), lambda i: (i, 0)),
        compiler_params=pltpu.CompilerParams(
            dimension_semantics=("parallel",),
            vmem_limit_bytes=int(vmem_limit),
        ),
    )(wt, x2, s2)

    return out2.reshape(T, B, Cx + Cs, Hs, Ws)


if __name__ == "__main__":
    key = jax.random.PRNGKey(0)
    k1, k2 = jax.random.split(key)

    T, B = 3, 2
    Cx, Hx, Wx = 4, 8, 8       # low-res branch
    Cs, Hs, Ws = 4, 16, 16     # skip (target spatial size)

    x = jax.random.normal(k1, (T, B, Cx, Hx, Wx), dtype=jnp.float32)
    skip = jax.random.normal(k2, (T, B, Cs, Hs, Ws), dtype=jnp.float32)

    out = merge_skip(x, skip)
    out = jax.block_until_ready(out)
    assert out.shape == (T, B, Cx + Cs, Hs, Ws), out.shape

    # Plain-JAX reference: same separable align_corners=False formulation.
    wh = _interp_matrix(Hx, Hs)
    ww = _interp_matrix(Wx, Ws)
    x_up_ref = jnp.einsum("ph,tbchw,ow->tbcpo", wh, x, ww)
    ref = jnp.concatenate((x_up_ref, skip), axis=2)
    assert jnp.allclose(out, ref, atol=1e-5, rtol=1e-5)

    print("KERNEL_OK")
</pallas_src>

<mosaic_0001>
module attributes {stable_mosaic.version = 11 : i64} {
  func.func private @main(%arg0: i32) attributes {dimension_semantics = [#tpu.dimension_semantics<core_parallel>], iteration_bounds = array<i64: 2>, tpu.core_type = #tpu.core_type<sc_scalar_subcore>, window_params = []} {
    return
  }
}

module attributes {stable_mosaic.version = 11 : i64} {
  func.func private @main(%arg0: i32) attributes {dimension_semantics = [#tpu.dimension_semantics<core_parallel>], iteration_bounds = array<i64: 2>, tpu.core_type = #tpu.core_type<sc_scalar_subcore>, window_params = []} {
    return
  }
}

module attributes {stable_mosaic.version = 11 : i64} {
  func.func @_merge_skip_kernel(%arg0: i32, %arg1: memref<64x256xf32, #tpu.memory_space<vmem>>, %arg2: memref<6x256xf32, #tpu.memory_space<vmem>>, %arg3: memref<6x1024xf32, #tpu.memory_space<vmem>>, %arg4: memref<6x2048xf32, #tpu.memory_space<vmem>>) attributes {dimension_semantics = [#tpu.dimension_semantics<parallel>], iteration_bounds = array<i64: 1>, scalar_prefetch = 0 : i64, scratch_operands = 0 : i64, tpu.core_type = #tpu.core_type<tc>, window_params = [{pipeline_mode = #tpu.pipeline_mode<synchronous>, transform_indices = @transform_0, window_bounds = array<i64: 64, 256>}, {transform_indices = @transform_1, window_bounds = array<i64: 6, 256>}, {transform_indices = @transform_2, window_bounds = array<i64: 6, 1024>}, {transform_indices = @transform_3, window_bounds = array<i64: 6, 2048>}]} {
    %c0 = arith.constant 0 : index
    %c0_0 = arith.constant 0 : index
    %0 = vector.load %arg1[%c0, %c0_0] : memref<64x256xf32, #tpu.memory_space<vmem>>, vector<64x256xf32>
    %c0_1 = arith.constant 0 : index
    %c0_2 = arith.constant 0 : index
    %1 = vector.load %arg2[%c0_1, %c0_2] : memref<6x256xf32, #tpu.memory_space<vmem>>, vector<6x256xf32>
    %2 = vector.extract_strided_slice %1 {offsets = [0, 0], sizes = [6, 64], strides = [1, 1]} : vector<6x256xf32> to vector<6x64xf32>
    %cst = arith.constant dense<0.000000e+00> : vector<6x256xf32>
    %3 = tpu.matmul %2, %0, %cst {dimension_numbers = #tpu.dot_dimension_numbers<[1], [0], [0], [1], [0, 0, 1, 1], [], []>} : vector<6x64xf32>, vector<64x256xf32>, vector<6x256xf32> -> vector<6x256xf32>
    %c0_3 = arith.constant 0 : index
    %c0_4 = arith.constant 0 : index
    %4 = vector.load %arg4[%c0_3, %c0_4] : memref<6x2048xf32, #tpu.memory_space<vmem>>, vector<6x256xf32>
    tpu.vector_store %arg4[%c0_3, %c0_4], %3 {strides = array<i32>} : memref<6x2048xf32, #tpu.memory_space<vmem>>, vector<6x256xf32>,
    %5 = vector.extract_strided_slice %1 {offsets = [0, 64], sizes = [6, 64], strides = [1, 1]} : vector<6x256xf32> to vector<6x64xf32>
    %cst_5 = arith.constant dense<0.000000e+00> : vector<6x256xf32>
    %6 = tpu.matmul %5, %0, %cst_5 {dimension_numbers = #tpu.dot_dimension_numbers<[1], [0], [0], [1], [0, 0, 1, 1], [], []>} : vector<6x64xf32>, vector<64x256xf32>, vector<6x256xf32> -> vector<6x256xf32>
    %c0_6 = arith.constant 0 : index
    %c256 = arith.constant 256 : index
    %7 = vector.load %arg4[%c0_6, %c256] : memref<6x2048xf32, #tpu.memory_space<vmem>>, vector<6x256xf32>
    tpu.vector_store %arg4[%c0_6, %c256], %6 {strides = array<i32>} : memref<6x2048xf32, #tpu.memory_space<vmem>>, vector<6x256xf32>,
    %8 = vector.extract_strided_slice %1 {offsets = [0, 128], sizes = [6, 64], strides = [1, 1]} : vector<6x256xf32> to vector<6x64xf32>
    %cst_7 = arith.constant dense<0.000000e+00> : vector<6x256xf32>
    %9 = tpu.matmul %8, %0, %cst_7 {dimension_numbers = #tpu.dot_dimension_numbers<[1], [0], [0], [1], [0, 0, 1, 1], [], []>} : vector<6x64xf32>, vector<64x256xf32>, vector<6x256xf32> -> vector<6x256xf32>
    %c0_8 = arith.constant 0 : index
    %c512 = arith.constant 512 : index
    %10 = vector.load %arg4[%c0_8, %c512] : memref<6x2048xf32, #tpu.memory_space<vmem>>, vector<6x256xf32>
    tpu.vector_store %arg4[%c0_8, %c512], %9 {strides = array<i32>} : memref<6x2048xf32, #tpu.memory_space<vmem>>, vector<6x256xf32>,
    %11 = vector.extract_strided_slice %1 {offsets = [0, 192], sizes = [6, 64], strides = [1, 1]} : vector<6x256xf32> to vector<6x64xf32>
    %cst_9 = arith.constant dense<0.000000e+00> : vector<6x256xf32>
    %12 = tpu.matmul %11, %0, %cst_9 {dimension_numbers = #tpu.dot_dimension_numbers<[1], [0], [0], [1], [0, 0, 1, 1], [], []>} : vector<6x64xf32>, vector<64x256xf32>, vector<6x256xf32> -> vector<6x256xf32>
    %c0_10 = arith.constant 0 : index
    %c768 = arith.constant 768 : index
    %13 = vector.load %arg4[%c0_10, %c768] : memref<6x2048xf32, #tpu.memory_space<vmem>>, vector<6x256xf32>
    tpu.vector_store %arg4[%c0_10, %c768], %12 {strides = array<i32>} : memref<6x2048xf32, #tpu.memory_space<vmem>>, vector<6x256xf32>,
    %c0_11 = arith.constant 0 : index
    %c0_12 = arith.constant 0 : index
    %14 = vector.load %arg3[%c0_11, %c0_12] : memref<6x1024xf32, #tpu.memory_space<vmem>>, vector<6x1024xf32>
    %c0_13 = arith.constant 0 : index
    %c1024 = arith.constant 1024 : index
    %15 = vector.load %arg4[%c0_13, %c1024] : memref<6x2048xf32, #tpu.memory_space<vmem>>, vector<6x1024xf32>
    tpu.vector_store %arg4[%c0_13, %c1024], %14 {strides = array<i32>} : memref<6x2048xf32, #tpu.memory_space<vmem>>, vector<6x1024xf32>,
    return
  }
  func.func @transform_0(%arg0: i32) -> (i32, i32) {
    %c0_i32 = arith.constant 0 : i32
    %c0_i32_0 = arith.constant 0 : i32
    %c0_i32_1 = arith.constant 0 : i32
    return %c0_i32, %c0_i32_0 : i32, i32
  }
  func.func @transform_1(%arg0: i32) -> (i32, i32) {
    %c0_i32 = arith.constant 0 : i32
    %c0_i32_0 = arith.constant 0 : i32
    return %arg0, %c0_i32 : i32, i32
  }
  func.func @transform_2(%arg0: i32) -> (i32, i32) {
    %c0_i32 = arith.constant 0 : i32
    %c0_i32_0 = arith.constant 0 : i32
    return %arg0, %c0_i32 : i32, i32
  }
  func.func @transform_3(%arg0: i32) -> (i32, i32) {
    %c0_i32 = arith.constant 0 : i32
    %c0_i32_0 = arith.constant 0 : i32
    return %arg0, %c0_i32 : i32, i32
  }
}

</mosaic_0001>

<llo_original>
// kernel: merge_skip.1
$region0: #{merge_skip.1}
  #allocation0 [shape = 'u32[]', space=smem, size = 0x4, offset = 0x4, fixed_abs, tag = 'smem constant byte address 0x4 - core index']
  #allocation1 [shape = 'u32[144,128]{1,0:T(1,128)}', space=vmem, size = 0x12000, scoped, tag = 'internal scratch']
  %s0 = inlined_call_operand.vmem [shape: f32[64,256], index: 0, kind: input, shape index: {}]
  %s1 = inlined_call_operand.vmem [shape: f32[6,256], index: 1, kind: input, shape index: {}]
  %s2 = inlined_call_operand.vmem [shape: f32[6,1024], index: 2, kind: input, shape index: {}]
  %s3 = inlined_call_operand.vmem [shape: f32[6,2048], index: 3, kind: output, shape index: {}]
  %s4 = sld [smem:[#allocation0]]
  $region22: #{merge_skip.1} parent=0
    _
  %s6 = ssub.s32 1, %s4
  %s7 = scalar_select 0, %s6, %s4
  // Predicated region
  $region2: #{merge_skip.1} parent=0 // pred_check
    _
  $region3: #{merge_skip.1} parent=0 // pred_check_branch
    %9 = sbr.rel (0) target = $region5
  $region4: #{merge_skip.1} parent=0 // pred_region
    _
  $region5: #{merge_skip.1} parent=0 // pred_fallthru
    _
  // Predicated region
  $region6: #{merge_skip.1} parent=0 // pred_check
    _
  $region7: #{merge_skip.1} parent=0 // pred_check_branch
    %11 = sbr.rel (0) target = $region9
  $region8: #{merge_skip.1} parent=0 // pred_region
    _
  $region9: #{merge_skip.1} parent=0 // pred_fallthru
    _
  // Predicated region
  $region10: #{merge_skip.1} parent=0 // pred_check
    _
  $region11: #{merge_skip.1} parent=0 // pred_check_branch
    %13 = sbr.rel (0) target = $region13
  $region12: #{merge_skip.1} parent=0 // pred_region
    _
  $region13: #{merge_skip.1} parent=0 // pred_fallthru
    _
  %v14 = vld [vmem:[%s0] sm:$0xff]
  %v15 = vld [vmem:[%s0 + $0x8] sm:$0xff]
  %v16 = vld [vmem:[%s0 + $0x10] sm:$0xff]
  %v17 = vld [vmem:[%s0 + $0x18] sm:$0xff]
  %v18 = vld [vmem:[%s0 + $0x20] sm:$0xff]
  %v19 = vld [vmem:[%s0 + $0x28] sm:$0xff]
  %v20 = vld [vmem:[%s0 + $0x30] sm:$0xff]
  %v21 = vld [vmem:[%s0 + $0x38] sm:$0xff]
  %v22 = vld [vmem:[%s0 + $0x40] sm:$0xff]
  %v23 = vld [vmem:[%s0 + $0x48] sm:$0xff]
  %v24 = vld [vmem:[%s0 + $0x50] sm:$0xff]
  %v25 = vld [vmem:[%s0 + $0x58] sm:$0xff]
  %v26 = vld [vmem:[%s0 + $0x60] sm:$0xff]
  %v27 = vld [vmem:[%s0 + $0x68] sm:$0xff]
  %v28 = vld [vmem:[%s0 + $0x70] sm:$0xff]
  %v29 = vld [vmem:[%s0 + $0x78] sm:$0xff]
  %v30 = vld [vmem:[%s1] sm:$0x3f]
  %v31 = vld [vmem:[%s1 + $0x8] sm:$0x3f]
  %vm32 = vcmask 523264
  %v34 = vsel %vm32, %v30, 0
  %36 = vmatprep.subr.mxu0 %v15
  %37 = vmatpush1.msra.mxu0 %v14
  %38 = vmatprep.subr.mxu0 %v17
  %39 = vmatpush1.msra.mxu0 %v16
  %40 = vmatprep.subr.mxu0 %v19
  %41 = vmatpush1.msra.mxu0 %v18
  %42 = vmatprep.subr.mxu0 %v21
  %43 = vmatpush1.msra.mxu0 %v20
  %44 = vmatprep.subr.mxu0 %v23
  %45 = vmatpush1.msra.mxu0 %v22
  %46 = vmatprep.subr.mxu0 %v25
  %47 = vmatpush1.msra.mxu0 %v24
  %48 = vmatprep.subr.mxu0 %v27
  %49 = vmatpush1.msra.mxu0 %v26
  %50 = vmatprep.subr.mxu0 %v29
  %51 = vmatpush1.msra.mxu0 %v28
  %52 = vmatprep.subr.mxu0 0.0
  %53 = vmatpush1.msra.mxu0 0.0
  %54 = vmatprep.subr.mxu0 0.0
  %55 = vmatpush1.msra.mxu0 0.0
  %56 = vmatprep.subr.mxu0 0.0
  %57 = vmatpush1.msra.mxu0 0.0
  %58 = vmatprep.subr.mxu0 0.0
  %59 = vmatpush1.msra.mxu0 0.0
  %60 = vmatprep.subr.mxu0 0.0
  %61 = vmatpush1.msra.mxu0 0.0
  %62 = vmatprep.subr.mxu0 0.0
  %63 = vmatpush1.msra.mxu0 0.0
  %64 = vmatprep.subr.mxu0 0.0
  %65 = vmatpush1.msra.mxu0 0.0
  %66 = vmatprep.subr.mxu0 0.0
  %67 = vmatpush1.msra.mxu0 0.0
  %68 = vmatprep.subr.mxu0 0.0
  %69 = vmatpush1.msra.mxu0 0.0
  %70 = vmatprep.subr.mxu0 0.0
  %71 = vmatpush1.msra.mxu0 0.0
  %72 = vmatprep.subr.mxu0 0.0
  %73 = vmatpush1.msra.mxu0 0.0
  %74 = vmatprep.subr.mxu0 0.0
  %75 = vmatpush1.msra.mxu0 0.0
  %76 = vmatprep.subr.mxu0 0.0
  %77 = vmatpush1.msra.mxu0 0.0
  %78 = vmatprep.subr.mxu0 0.0
  %79 = vmatpush1.msra.mxu0 0.0
  %80 = vmatprep.subr.mxu0 0.0
  %81 = vmatpush1.msra.mxu0 0.0
  %82 = vmatprep.subr.mxu0 0.0
  %83 = vmatpush1.msra.mxu0 0.0
  %84 = vmatprep.subr.mxu0 0.0
  %85 = vmatpush1.msra.mxu0 0.0
  %86 = vmatprep.subr.mxu0 0.0
  %87 = vmatpush1.msra.mxu0 0.0
  %88 = vmatprep.subr.mxu0 0.0
  %89 = vmatpush1.msra.mxu0 0.0
  %90 = vmatprep.subr.mxu0 0.0
  %91 = vmatpush1.msra.mxu0 0.0
  %92 = vmatprep.subr.mxu0 0.0
  %93 = vmatpush1.msra.mxu0 0.0
  %94 = vmatprep.subr.mxu0 0.0
  %95 = vmatpush1.msra.mxu0 0.0
  %96 = vmatprep.subr.mxu0 0.0
  %97 = vmatpush1.msra.mxu0 0.0
  %98 = vmatprep.subr.mxu0 0.0
  %99 = vmatpush1.msra.mxu0 0.0
  %100 = vmatprep.mubr.f32.mxu0 0.0
  %101 = vmatmul.mubr.f32.gmra.mrb[0].mxu0 %v34
  %v102 = vpop.f32.mrb[0].mxu0
  %v103 = vadd.f32 0.0, %v102
  %v104 = vpop.f32.mrb[0].mxu0
  %v105 = vadd.f32 0.0, %v104
  %106 = vdwg.mxu0
  %107 = vst [vmem:[%s3] sm:$0x3f] %v103
  %108 = vst [vmem:[%s3 + $0x8] sm:$0x3f] %v105
  %109 = vrot.lane.b32.xlu0 %v30, 64
  %v110 = vpop.permute.xlu0 %109
  %v111 = vsel %vm32, %v110, 0
  %113 = vmatprep.subr.mxu0 %v15
  %114 = vmatpush1.msra.mxu0 %v14
  %115 = vmatprep.subr.mxu0 %v17
  %116 = vmatpush1.msra.mxu0 %v16
  %117 = vmatprep.subr.mxu0 %v19
  %118 = vmatpush1.msra.mxu0 %v18
  %119 = vmatprep.subr.mxu0 %v21
  %120 = vmatpush1.msra.mxu0 %v20
  %121 = vmatprep.subr.mxu0 %v23
  %122 = vmatpush1.msra.mxu0 %v22
  %123 = vmatprep.subr.mxu0 %v25
  %124 = vmatpush1.msra.mxu0 %v24
  %125 = vmatprep.subr.mxu0 %v27
  %126 = vmatpush1.msra.mxu0 %v26
  %127 = vmatprep.subr.mxu0 %v29
  %128 = vmatpush1.msra.mxu0 %v28
  %129 = vmatprep.subr.mxu0 0.0
  %130 = vmatpush1.msra.mxu0 0.0
  %131 = vmatprep.subr.mxu0 0.0
  %132 = vmatpush1.msra.mxu0 0.0
  %133 = vmatprep.subr.mxu0 0.0
  %134 = vmatpush1.msra.mxu0 0.0
  %135 = vmatprep.subr.mxu0 0.0
  %136 = vmatpush1.msra.mxu0 0.0
  %137 = vmatprep.subr.mxu0 0.0
  %138 = vmatpush1.msra.mxu0 0.0
  %139 = vmatprep.subr.mxu0 0.0
  %140 = vmatpush1.msra.mxu0 0.0
  %141 = vmatprep.subr.mxu0 0.0
  %142 = vmatpush1.msra.mxu0 0.0
  %143 = vmatprep.subr.mxu0 0.0
  %144 = vmatpush1.msra.mxu0 0.0
  %145 = vmatprep.subr.mxu0 0.0
  %146 = vmatpush1.msra.mxu0 0.0
  %147 = vmatprep.subr.mxu0 0.0
  %148 = vmatpush1.msra.mxu0 0.0
  %149 = vmatprep.subr.mxu0 0.0
  %150 = vmatpush1.msra.mxu0 0.0
  %151 = vmatprep.subr.mxu0 0.0
  %152 = vmatpush1.msra.mxu0 0.0
  %153 = vmatprep.subr.mxu0 0.0
  %154 = vmatpush1.msra.mxu0 0.0
  %155 = vmatprep.subr.mxu0 0.0
  %156 = vmatpush1.msra.mxu0 0.0
  %157 = vmatprep.subr.mxu0 0.0
  %158 = vmatpush1.msra.mxu0 0.0
  %159 = vmatprep.subr.mxu0 0.0
  %160 = vmatpush1.msra.mxu0 0.0
  %161 = vmatprep.subr.mxu0 0.0
  %162 = vmatpush1.msra.mxu0 0.0
  %163 = vmatprep.subr.mxu0 0.0
  %164 = vmatpush1.msra.mxu0 0.0
  %165 = vmatprep.subr.mxu0 0.0
  %166 = vmatpush1.msra.mxu0 0.0
  %167 = vmatprep.subr.mxu0 0.0
  %168 = vmatpush1.msra.mxu0 0.0
  %169 = vmatprep.subr.mxu0 0.0
  %170 = vmatpush1.msra.mxu0 0.0
  %171 = vmatprep.subr.mxu0 0.0
  %172 = vmatpush1.msra.mxu0 0.0
  %173 = vmatprep.subr.mxu0 0.0
  %174 = vmatpush1.msra.mxu0 0.0
  %175 = vmatprep.subr.mxu0 0.0
  %176 = vmatpush1.msra.mxu0 0.0
  %177 = vmatprep.mubr.f32.mxu0 0.0
  %178 = vmatmul.mubr.f32.gmra.mrb[0].mxu0 %v111
  %v179 = vpop.f32.mrb[0].mxu0
  %v180 = vadd.f32 0.0, %v179
  %v181 = vpop.f32.mrb[0].mxu0
  %v182 = vadd.f32 0.0, %v181
  %183 = vdwg.mxu0
  %184 = vst [vmem:[%s3 + $0x10] sm:$0x3f] %v180
  %185 = vst [vmem:[%s3 + $0x18] sm:$0x3f] %v182
  %v187 = vsel %vm32, %v31, 0
  %189 = vmatprep.subr.mxu0 %v15
  %190 = vmatpush1.msra.mxu0 %v14
  %191 = vmatprep.subr.mxu0 %v17
  %192 = vmatpush1.msra.mxu0 %v16
  %193 = vmatprep.subr.mxu0 %v19
  %194 = vmatpush1.msra.mxu0 %v18
  %195 = vmatprep.subr.mxu0 %v21
  %196 = vmatpush1.msra.mxu0 %v20
  %197 = vmatprep.subr.mxu0 %v23
  %198 = vmatpush1.msra.mxu0 %v22
  %199 = vmatprep.subr.mxu0 %v25
  %200 = vmatpush1.msra.mxu0 %v24
  %201 = vmatprep.subr.mxu0 %v27
  %202 = vmatpush1.msra.mxu0 %v26
  %203 = vmatprep.subr.mxu0 %v29
  %204 = vmatpush1.msra.mxu0 %v28
  %205 = vmatprep.subr.mxu0 0.0
  %206 = vmatpush1.msra.mxu0 0.0
  %207 = vmatprep.subr.mxu0 0.0
  %208 = vmatpush1.msra.mxu0 0.0
  %209 = vmatprep.subr.mxu0 0.0
  %210 = vmatpush1.msra.mxu0 0.0
  %211 = vmatprep.subr.mxu0 0.0
  %212 = vmatpush1.msra.mxu0 0.0
  %213 = vmatprep.subr.mxu0 0.0
  %214 = vmatpush1.msra.mxu0 0.0
  %215 = vmatprep.subr.mxu0 0.0
  %216 = vmatpush1.msra.mxu0 0.0
  %217 = vmatprep.subr.mxu0 0.0
  %218 = vmatpush1.msra.mxu0 0.0
  %219 = vmatprep.subr.mxu0 0.0
  %220 = vmatpush1.msra.mxu0 0.0
  %221 = vmatprep.subr.mxu0 0.0
  %222 = vmatpush1.msra.mxu0 0.0
  %223 = vmatprep.subr.mxu0 0.0
  %224 = vmatpush1.msra.mxu0 0.0
  %225 = vmatprep.subr.mxu0 0.0
  %226 = vmatpush1.msra.mxu0 0.0
  %227 = vmatprep.subr.mxu0 0.0
  %228 = vmatpush1.msra.mxu0 0.0
  %229 = vmatprep.subr.mxu0 0.0
  %230 = vmatpush1.msra.mxu0 0.0
  %231 = vmatprep.subr.mxu0 0.0
  %232 = vmatpush1.msra.mxu0 0.0
  %233 = vmatprep.subr.mxu0 0.0
  %234 = vmatpush1.msra.mxu0 0.0
  %235 = vmatprep.subr.mxu0 0.0
  %236 = vmatpush1.msra.mxu0 0.0
  %237 = vmatprep.subr.mxu0 0.0
  %238 = vmatpush1.msra.mxu0 0.0
  %239 = vmatprep.subr.mxu0 0.0
  %240 = vmatpush1.msra.mxu0 0.0
  %241 = vmatprep.subr.mxu0 0.0
  %242 = vmatpush1.msra.mxu0 0.0
  %243 = vmatprep.subr.mxu0 0.0
  %244 = vmatpush1.msra.mxu0 0.0
  %245 = vmatprep.subr.mxu0 0.0
  %246 = vmatpush1.msra.mxu0 0.0
  %247 = vmatprep.subr.mxu0 0.0
  %248 = vmatpush1.msra.mxu0 0.0
  %249 = vmatprep.subr.mxu0 0.0
  %250 = vmatpush1.msra.mxu0 0.0
  %251 = vmatprep.subr.mxu0 0.0
  %252 = vmatpush1.msra.mxu0 0.0
  %253 = vmatprep.mubr.f32.mxu0 0.0
  %254 = vmatmul.mubr.f32.gmra.mrb[0].mxu0 %v187
  %v255 = vpop.f32.mrb[0].mxu0
  %v256 = vadd.f32 0.0, %v255
  %v257 = vpop.f32.mrb[0].mxu0
  %v258 = vadd.f32 0.0, %v257
  %259 = vdwg.mxu0
  %260 = vst [vmem:[%s3 + $0x20] sm:$0x3f] %v256
  %261 = vst [vmem:[%s3 + $0x28] sm:$0x3f] %v258
  %262 = vrot.lane.b32.xlu0 %v31, 64
  %v263 = vpop.permute.xlu0 %262
  %v264 = vsel %vm32, %v263, 0
  %266 = vmatprep.subr.mxu0 %v15
  %267 = vmatpush1.msra.mxu0 %v14
  %268 = vmatprep.subr.mxu0 %v17
  %269 = vmatpush1.msra.mxu0 %v16
  %270 = vmatprep.subr.mxu0 %v19
  %271 = vmatpush1.msra.mxu0 %v18
  %272 = vmatprep.subr.mxu0 %v21
  %273 = vmatpush1.msra.mxu0 %v20
  %274 = vmatprep.subr.mxu0 %v23
  %275 = vmatpush1.msra.mxu0 %v22
  %276 = vmatprep.subr.mxu0 %v25
  %277 = vmatpush1.msra.mxu0 %v24
  %278 = vmatprep.subr.mxu0 %v27
  %279 = vmatpush1.msra.mxu0 %v26
  %280 = vmatprep.subr.mxu0 %v29
  %281 = vmatpush1.msra.mxu0 %v28
  %282 = vmatprep.subr.mxu0 0.0
  %283 = vmatpush1.msra.mxu0 0.0
  %284 = vmatprep.subr.mxu0 0.0
  %285 = vmatpush1.msra.mxu0 0.0
  %286 = vmatprep.subr.mxu0 0.0
  %287 = vmatpush1.msra.mxu0 0.0
  %288 = vmatprep.subr.mxu0 0.0
  %289 = vmatpush1.msra.mxu0 0.0
  %290 = vmatprep.subr.mxu0 0.0
  %291 = vmatpush1.msra.mxu0 0.0
  %292 = vmatprep.subr.mxu0 0.0
  %293 = vmatpush1.msra.mxu0 0.0
  %294 = vmatprep.subr.mxu0 0.0
  %295 = vmatpush1.msra.mxu0 0.0
  %296 = vmatprep.subr.mxu0 0.0
  %297 = vmatpush1.msra.mxu0 0.0
  %298 = vmatprep.subr.mxu0 0.0
  %299 = vmatpush1.msra.mxu0 0.0
  %300 = vmatprep.subr.mxu0 0.0
  %301 = vmatpush1.msra.mxu0 0.0
  %302 = vmatprep.subr.mxu0 0.0
  %303 = vmatpush1.msra.mxu0 0.0
  %304 = vmatprep.subr.mxu0 0.0
  %305 = vmatpush1.msra.mxu0 0.0
  %306 = vmatprep.subr.mxu0 0.0
  %307 = vmatpush1.msra.mxu0 0.0
  %308 = vmatprep.subr.mxu0 0.0
  %309 = vmatpush1.msra.mxu0 0.0
  %310 = vmatprep.subr.mxu0 0.0
  %311 = vmatpush1.msra.mxu0 0.0
  %312 = vmatprep.subr.mxu0 0.0
  %313 = vmatpush1.msra.mxu0 0.0
  %314 = vmatprep.subr.mxu0 0.0
  %315 = vmatpush1.msra.mxu0 0.0
  %316 = vmatprep.subr.mxu0 0.0
  %317 = vmatpush1.msra.mxu0 0.0
  %318 = vmatprep.subr.mxu0 0.0
  %319 = vmatpush1.msra.mxu0 0.0
  %320 = vmatprep.subr.mxu0 0.0
  %321 = vmatpush1.msra.mxu0 0.0
  %322 = vmatprep.subr.mxu0 0.0
  %323 = vmatpush1.msra.mxu0 0.0
  %324 = vmatprep.subr.mxu0 0.0
  %325 = vmatpush1.msra.mxu0 0.0
  %326 = vmatprep.subr.mxu0 0.0
  %327 = vmatpush1.msra.mxu0 0.0
  %328 = vmatprep.subr.mxu0 0.0
  %329 = vmatpush1.msra.mxu0 0.0
  %330 = vmatprep.mubr.f32.mxu0 0.0
  %331 = vmatmul.mubr.f32.gmra.mrb[0].mxu0 %v264
  %v332 = vpop.f32.mrb[0].mxu0
  %v333 = vadd.f32 0.0, %v332
  %v334 = vpop.f32.mrb[0].mxu0
  %v335 = vadd.f32 0.0, %v334
  %336 = vdwg.mxu0
  %337 = vst [vmem:[%s3 + $0x30] sm:$0x3f] %v333
  %338 = vst [vmem:[%s3 + $0x38] sm:$0x3f] %v335
  %v339 = vld [vmem:[%s2] sm:$0x3f]
  %v340 = vld [vmem:[%s2 + $0x8] sm:$0x3f]
  %v341 = vld [vmem:[%s2 + $0x10] sm:$0x3f]
  %v342 = vld [vmem:[%s2 + $0x18] sm:$0x3f]
  %v343 = vld [vmem:[%s2 + $0x20] sm:$0x3f]
  %v344 = vld [vmem:[%s2 + $0x28] sm:$0x3f]
  %v345 = vld [vmem:[%s2 + $0x30] sm:$0x3f]
  %v346 = vld [vmem:[%s2 + $0x38] sm:$0x3f]
  %347 = vst [vmem:[%s3 + $0x40] sm:$0x3f] %v339
  %348 = vst [vmem:[%s3 + $0x48] sm:$0x3f] %v340
  %349 = vst [vmem:[%s3 + $0x50] sm:$0x3f] %v341
  %350 = vst [vmem:[%s3 + $0x58] sm:$0x3f] %v342
  %351 = vst [vmem:[%s3 + $0x60] sm:$0x3f] %v343
  %352 = vst [vmem:[%s3 + $0x68] sm:$0x3f] %v344
  %353 = vst [vmem:[%s3 + $0x70] sm:$0x3f] %v345
  %354 = vst [vmem:[%s3 + $0x78] sm:$0x3f] %v346
  // Predicated region
  $region14: #{merge_skip.1} parent=0 // pred_check
    _
  $region15: #{merge_skip.1} parent=0 // pred_check_branch
    %356 = sbr.rel (0) target = $region17
  $region16: #{merge_skip.1} parent=0 // pred_region
    _
  $region17: #{merge_skip.1} parent=0 // pred_fallthru
    _
  // Predicated region
  $region18: #{merge_skip.1} parent=0 // pred_check
    _
  $region19: #{merge_skip.1} parent=0 // pred_check_branch
    %358 = sbr.rel (0) target = $region21
  $region20: #{merge_skip.1} parent=0 // pred_region
    _
  $region21: #{merge_skip.1} parent=0 // pred_fallthru
    _

</llo_original>
